<compile_context>
chip_gen: v7x
topology: tpu7x:2x2x1
jax: 0.10.0
libtpu: 0.0.40
codegen_flags: <defaults>
</compile_context>

<pallas_src>
import functools

import jax
import jax.numpy as jnp
from jax.experimental import pallas as pl
from jax.experimental.pallas import tpu as pltpu


# ----------------------------- helpers --------------------------------------

def _round_up(x: int, m: int) -> int:
    return ((x + m - 1) // m) * m


def _pick_tile(dim: int, target: int, align: int) -> int:
    """Largest divisor of `dim` that is <= target and a multiple of `align`.

    `dim` must itself be a multiple of `align`, so this always succeeds and
    padding never exceeds one alignment unit (done by the caller beforehand).
    """
    t = min(target, dim)
    t = max((t // align) * align, align)
    while dim % t != 0:
        t -= align
    return t


_FULL_K_MAX = 2048   # max D_in (f32 elems) kept as a single full-K block
_TM_TARGET = 256
_TN_TARGET = 256
_TK_TARGET = 2048


# ----------------------------- kernels --------------------------------------

def _aux_head_fullk_kernel(x_ref, w_ref, b_ref, o_ref):
    # Single K step: no scratch, no epilogue -- dot + bias straight to o_ref.
    # x_ref: (tm, K), w_ref: (K, tn)  ->  contraction on W^T's leading dim,
    # which the MXU takes natively (no in-kernel tile transpose).
    o_ref[...] = (
        jnp.dot(x_ref[...], w_ref[...], preferred_element_type=jnp.float32)
        + b_ref[...]
    ).astype(o_ref.dtype)


def _aux_head_mnk_kernel(x_ref, w_ref, b_ref, o_ref, acc_ref):
    k = pl.program_id(2)

    @pl.when(k == 0)
    def _():
        # Seed the accumulator with the bias: removes the zero-fill and the
        # epilogue add (numerically identical).
        acc_ref[...] = jnp.broadcast_to(
            b_ref[...].astype(jnp.float32), acc_ref.shape)

    acc_ref[...] += jnp.dot(
        x_ref[...], w_ref[...], preferred_element_type=jnp.float32)

    @pl.when(k == pl.num_programs(2) - 1)
    def _():
        o_ref[...] = acc_ref[...].astype(o_ref.dtype)


# ----------------------------- wrappers -------------------------------------

def prepare_aux_head_params(weight: jax.Array, bias: jax.Array,
                            param_dtype=None):
    """One-time parameter layout transform (do this at module init, NOT per call).

    weight: (D_out, D_in) PyTorch nn.Linear layout.
    Returns (wT_padded, bias_padded) with:
      wT_padded: (D_in_or_padded, N_pad)   -- W transposed, N padded to 128,
                                              K padded to 128 only if a K grid
                                              will be needed (D_in > _FULL_K_MAX)
      bias_padded: (1, N_pad) f32
    """
    D_out, D_in = weight.shape
    assert bias.shape == (D_out,)
    n_pad = _round_up(D_out, 128)

    wT = weight.T                                     # (D_in, D_out)
    if D_in > _FULL_K_MAX:
        # K grid path -> K must be (8,128)-tileable.
        wT = jnp.pad(wT, ((0, _round_up(D_in, 128) - D_in), (0, 0)))
    wT = jnp.pad(wT, ((0, 0), (0, n_pad - D_out)))
    b2 = jnp.pad(bias.astype(jnp.float32), (0, n_pad - D_out)).reshape(1, n_pad)
    if param_dtype is not None:                       # e.g. jnp.bfloat16
        wT = wT.astype(param_dtype)
    return wT, b2


@functools.partial(jax.jit, static_argnames=("d_out",))
def aux_head_forward(logits: jax.Array, wT: jax.Array, b2: jax.Array,
                     *, d_out: int) -> jax.Array:
    """logits: (B, D_in); wT/b2 from prepare_aux_head_params -> (B, d_out)."""
    B, D_in = logits.shape
    K_w, n_pad = wT.shape
    assert b2.shape == (1, n_pad)

    out_dtype = logits.dtype
    x = logits if logits.dtype == wT.dtype else logits.astype(wT.dtype)

    cost = pl.CostEstimate(
        flops=2 * B * D_in * d_out,
        transcendentals=0,
        bytes_accessed=4 * (B * D_in + D_in * d_out + d_out + B * d_out),
    )

    if D_in <= _FULL_K_MAX:
        # ---------------- single full-K block: no scratch, no K grid --------
        assert K_w == D_in, "params were prepared for a different D_in"
        if B <= _TM_TARGET:
            tm, m_pad = B, B                 # block == full dim: no x padding
        else:
            m_pad = _round_up(B, 8)
            tm = _pick_tile(m_pad, _TM_TARGET, 8)
            if m_pad != B:
                x = jnp.pad(x, ((0, m_pad - B), (0, 0)))
        tn = _pick_tile(n_pad, _TN_TARGET, 128)
        grid = (m_pad // tm, n_pad // tn)

        out_padded = pl.pallas_call(
            _aux_head_fullk_kernel,
            out_shape=jax.ShapeDtypeStruct((m_pad, n_pad), out_dtype),
            grid_spec=pltpu.PrefetchScalarGridSpec(
                num_scalar_prefetch=0,
                grid=grid,
                in_specs=[
                    pl.BlockSpec((tm, D_in), lambda i, j: (i, 0)),   # x
                    pl.BlockSpec((D_in, tn), lambda i, j: (0, j)),   # W^T
                    pl.BlockSpec((1, tn), lambda i, j: (0, j)),      # bias
                ],
                out_specs=pl.BlockSpec((tm, tn), lambda i, j: (i, j)),
            ),
            compiler_params=pltpu.CompilerParams(
                dimension_semantics=("parallel", "parallel"),
            ),
            cost_estimate=cost,
        )(x, wT, b2)
    else:
        # ---------------- general MNK grid with f32 accumulator -------------
        k_pad = _round_up(D_in, 128)
        assert K_w == k_pad, "params were prepared for a different D_in"
        m_pad = _round_up(B, 8)
        tm = _pick_tile(m_pad, _TM_TARGET, 8)
        tn = _pick_tile(n_pad, _TN_TARGET, 128)
        tk = _pick_tile(k_pad, _TK_TARGET, 128)
        # v7x megacore: if the parallel axes expose only one block, split M so
        # both TensorCores get work.
        if (m_pad // tm) * (n_pad // tn) == 1 and m_pad >= 16:
            tm = _pick_tile(m_pad, m_pad // 2, 8)
        if (m_pad, k_pad) != (B, D_in):
            x = jnp.pad(x, ((0, m_pad - B), (0, k_pad - D_in)))
        grid = (m_pad // tm, n_pad // tn, k_pad // tk)

        out_padded = pl.pallas_call(
            _aux_head_mnk_kernel,
            out_shape=jax.ShapeDtypeStruct((m_pad, n_pad), out_dtype),
            grid_spec=pltpu.PrefetchScalarGridSpec(
                num_scalar_prefetch=0,
                grid=grid,
                in_specs=[
                    pl.BlockSpec((tm, tk), lambda i, j, k: (i, k)),   # x
                    pl.BlockSpec((tk, tn), lambda i, j, k: (k, j)),   # W^T
                    pl.BlockSpec((1, tn), lambda i, j, k: (0, j)),    # bias
                ],
                out_specs=pl.BlockSpec((tm, tn), lambda i, j, k: (i, j)),
                scratch_shapes=[pltpu.VMEM((tm, tn), jnp.float32)],
            ),
            compiler_params=pltpu.CompilerParams(
                dimension_semantics=("parallel", "parallel", "arbitrary"),
            ),
            cost_estimate=cost,
        )(x, wT, b2)

    return out_padded[:B, :d_out]


def reference_forward(logits, weight, bias):
    return logits @ weight.T + bias


# ----------------------------- demo / test ----------------------------------

if __name__ == "__main__":
    key = jax.random.PRNGKey(0)
    k_x, k_w, k_b = jax.random.split(key, 3)

    # Small shapes consistent with AuxHead(out_features=8) on a (B, 32) input.
    B, D_in, D_out = 2, 32, 8

    logits = jax.random.normal(k_x, (B, D_in), dtype=jnp.float32)
    # Deterministic "Linear" parameter init (Kaiming-uniform-ish scale).
    bound = 1.0 / (D_in ** 0.5)
    weight = jax.random.uniform(k_w, (D_out, D_in), minval=-bound, maxval=bound,
                                dtype=jnp.float32)
    bias = jax.random.uniform(k_b, (D_out,), minval=-bound, maxval=bound,
                              dtype=jnp.float32)

    # One-time parameter layout transform (would live in module init).
    wT, b2 = prepare_aux_head_params(weight, bias)

    out = aux_head_forward(logits, wT, b2, d_out=D_out)
    out = jax.block_until_ready(out)

    ref = reference_forward(logits, weight, bias)
    assert out.shape == (B, D_out)
    assert jnp.allclose(out, ref, atol=1e-5, rtol=1e-5), "mismatch vs reference"

    print("KERNEL_OK")
</pallas_src>

<mosaic_0001>
module attributes {stable_mosaic.version = 11 : i64} {
  func.func @_aux_head_fullk_kernel(%arg0: i32, %arg1: i32, %arg2: memref<2x32xf32, #tpu.memory_space<vmem>>, %arg3: memref<32x128xf32, #tpu.memory_space<vmem>>, %arg4: memref<1x128xf32, #tpu.memory_space<vmem>>, %arg5: memref<2x128xf32, #tpu.memory_space<vmem>>) attributes {dimension_semantics = [#tpu.dimension_semantics<parallel>, #tpu.dimension_semantics<parallel>], iteration_bounds = array<i64: 1, 1>, scalar_prefetch = 0 : i64, scratch_operands = 0 : i64, tpu.core_type = #tpu.core_type<tc>, window_params = [{transform_indices = @transform_0, window_bounds = array<i64: 2, 32>}, {transform_indices = @transform_1, window_bounds = array<i64: 32, 128>}, {transform_indices = @transform_2, window_bounds = array<i64: 1, 128>}, {transform_indices = @transform_3, window_bounds = array<i64: 2, 128>}]} {
    %c0 = arith.constant 0 : index
    %c0_0 = arith.constant 0 : index
    %0 = vector.load %arg2[%c0, %c0_0] : memref<2x32xf32, #tpu.memory_space<vmem>>, vector<2x32xf32>
    %c0_1 = arith.constant 0 : index
    %c0_2 = arith.constant 0 : index
    %1 = vector.load %arg3[%c0_1, %c0_2] : memref<32x128xf32, #tpu.memory_space<vmem>>, vector<32x128xf32>
    %cst = arith.constant dense<0.000000e+00> : vector<2x128xf32>
    %2 = tpu.matmul %0, %1, %cst {dimension_numbers = #tpu.dot_dimension_numbers<[1], [0], [0], [1], [0, 0, 1, 1], [], []>} : vector<2x32xf32>, vector<32x128xf32>, vector<2x128xf32> -> vector<2x128xf32>
    %c0_3 = arith.constant 0 : index
    %c0_4 = arith.constant 0 : index
    %3 = vector.load %arg4[%c0_3, %c0_4] : memref<1x128xf32, #tpu.memory_space<vmem>>, vector<1x128xf32>
    %4 = vector.broadcast %3 : vector<1x128xf32> to vector<2x128xf32>
    %5 = arith.addf %2, %4 : vector<2x128xf32>
    %c0_5 = arith.constant 0 : index
    %c0_6 = arith.constant 0 : index
    %6 = vector.load %arg5[%c0_5, %c0_6] : memref<2x128xf32, #tpu.memory_space<vmem>>, vector<2x128xf32>
    tpu.vector_store %arg5[%c0_5, %c0_6], %5 {strides = array<i32>} : memref<2x128xf32, #tpu.memory_space<vmem>>, vector<2x128xf32>,
    return
  }
  func.func @transform_0(%arg0: i32, %arg1: i32) -> (i32, i32) {
    %c0_i32 = arith.constant 0 : i32
    %c0_i32_0 = arith.constant 0 : i32
    return %arg0, %c0_i32 : i32, i32
  }
  func.func @transform_1(%arg0: i32, %arg1: i32) -> (i32, i32) {
    %c0_i32 = arith.constant 0 : i32
    %c0_i32_0 = arith.constant 0 : i32
    return %c0_i32, %arg1 : i32, i32
  }
  func.func @transform_2(%arg0: i32, %arg1: i32) -> (i32, i32) {
    %c0_i32 = arith.constant 0 : i32
    %c0_i32_0 = arith.constant 0 : i32
    return %c0_i32, %arg1 : i32, i32
  }
  func.func @transform_3(%arg0: i32, %arg1: i32) -> (i32, i32) {
    %c0_i32 = arith.constant 0 : i32
    return %arg0, %arg1 : i32, i32
  }
}

</mosaic_0001>

<llo_original>
// kernel: aux_head_forward.1
$region0: #{aux_head_forward.1}
  #allocation0 [shape = 'u32[]', space=smem, size = 0x4, offset = 0x4, fixed_abs, tag = 'smem constant byte address 0x4 - core index']
  #allocation1 [shape = 'u32[144,128]{1,0:T(1,128)}', space=vmem, size = 0x12000, scoped, tag = 'internal scratch']
  %s0 = inlined_call_operand.hbm [shape: f32[2,32], index: 0, kind: input, shape index: {}]
  %s1 = inlined_call_operand.hbm [shape: f32[32,128], index: 1, kind: input, shape index: {}]
  %s2 = inlined_call_operand.vmem [shape: f32[1,128], index: 2, kind: input, shape index: {}]
  %s3 = inlined_call_operand.hbm [shape: f32[2,128], index: 3, kind: output, shape index: {}]
  %s4 = sld [smem:[#allocation0]]
  $region30: #{aux_head_forward.1} parent=0
    _
  %s6 = ssub.s32 1, %s4
  %s7 = scalar_select 0, %s6, %s4
  $region1: #{aux_head_forward.1} parent=0
    #allocation2 [shape = 'u8[1024]{0}', space=vmem, size = 0x400, scoped, tag = 'input window, operand 0, single buffered']
    #allocation3 [shape = 's32[1]{0}', space=sflag, size = 0x4, scoped, tag = 'scoped memory for aux_head_forward.1']
    #allocation4 [shape = 's32[1]{0}', space=sflag, size = 0x4, scoped, tag = 'scoped memory for aux_head_forward.1']
    #allocation5 [shape = 'u8[16384]{0}', space=vmem, size = 0x4000, scoped, tag = 'input window, operand 1, single buffered']
    #allocation6 [shape = 's32[1]{0}', space=sflag, size = 0x4, scoped, tag = 'scoped memory for aux_head_forward.1']
    #allocation7 [shape = 'u8[1024]{0}', space=vmem, size = 0x400, scoped, tag = 'output window, operand 0, single buffered']
    %8 = vsyncpa [#allocation3], 0
    %9 = vsyncpa [#allocation6], 0
    %10 = vsyncpa [#allocation4], 0
    // Predicated region
    $region2: #{aux_head_forward.1} parent=1 // pred_check
      _
    $region3: #{aux_head_forward.1} parent=1 // pred_check_branch
      %12 = sbr.rel (0) target = $region5
    $region4: #{aux_head_forward.1} parent=1 // pred_region
      %s14 = ssub.s32 32, 32
      %15 = vsyncadd [#allocation3], %s14
      %s17 = sshll.u32 [#allocation2], 4
      %s18 = int_to_ptr.vmem [resolvable:$true] %s17
      %20 = dma.hbm_to_vmem [thread:$0]  %s0, 32, %s18, [#allocation3]
    $region5: #{aux_head_forward.1} parent=1 // pred_fallthru
      _
    // Predicated region
    $region6: #{aux_head_forward.1} parent=1 // pred_check
      _
    $region7: #{aux_head_forward.1} parent=1 // pred_check_branch
      %22 = sbr.rel (0) target = $region9
    $region8: #{aux_head_forward.1} parent=1 // pred_region
      %s24 = ssub.s32 512, 512
      %25 = vsyncadd [#allocation6], %s24
      %s26 = sshll.u32 [#allocation5], 4
      %s27 = int_to_ptr.vmem [resolvable:$true] %s26
      %32 = dma.hbm_to_vmem [thread:$0]  %s1, 512, %s27, [#allocation6], 128, 128, 8
    $region9: #{aux_head_forward.1} parent=1 // pred_fallthru
      _
    // Predicated region
    $region10: #{aux_head_forward.1} parent=1 // pred_check
      _
    $region11: #{aux_head_forward.1} parent=1 // pred_check_branch
      %34 = sbr.rel (0) target = $region13
    $region12: #{aux_head_forward.1} parent=1 // pred_region
      _
    $region13: #{aux_head_forward.1} parent=1 // pred_fallthru
      _
    // Predicated region
    $region14: #{aux_head_forward.1} parent=1 // pred_check
      _
    $region15: #{aux_head_forward.1} parent=1 // pred_check_branch
      %36 = sbr.rel (0) target = $region17
    $region16: #{aux_head_forward.1} parent=1 // pred_region
      %37 = dma.done [#allocation3], 32
    $region17: #{aux_head_forward.1} parent=1 // pred_fallthru
      _
    // Predicated region
    $region18: #{aux_head_forward.1} parent=1 // pred_check
      _
    $region19: #{aux_head_forward.1} parent=1 // pred_check_branch
      %39 = sbr.rel (0) target = $region21
    $region20: #{aux_head_forward.1} parent=1 // pred_region
      %40 = dma.done [#allocation6], 512
    $region21: #{aux_head_forward.1} parent=1 // pred_fallthru
      _
    %v41 = vld [vmem:[#allocation2] sm:$0x3]
    %v42 = vld [vmem:[#allocation5] sm:$0xff]
    %v43 = vld [vmem:[#allocation5 + $0x8] sm:$0xff]
    %v44 = vld [vmem:[#allocation5 + $0x10] sm:$0xff]
    %v45 = vld [vmem:[#allocation5 + $0x18] sm:$0xff]
    %v46 = vld [vmem:[%s2] sm:$0x1]
    %v48 = vlaneseq
    %v49 = vshrl.u32 %v48, 7
    %v50 = vsub.s32 0, %v49
    %v51 = vrot.slane %v46, %v50
    %vm53 = vcmask 261120
    %v55 = vsel %vm53, %v41, 0
    %57 = vmatprep.subr.mxu0 0.0
    %58 = vmatpush1.msra.mxu0 %v42
    %59 = vmatprep.subr.mxu0 0.0
    %60 = vmatpush1.msra.mxu0 %v43
    %61 = vmatprep.subr.mxu0 0.0
    %62 = vmatpush1.msra.mxu0 %v44
    %63 = vmatprep.subr.mxu0 0.0
    %64 = vmatpush1.msra.mxu0 %v45
    %65 = vmatprep.subr.mxu0 0.0
    %66 = vmatpush1.msra.mxu0 0.0
    %67 = vmatprep.subr.mxu0 0.0
    %68 = vmatpush1.msra.mxu0 0.0
    %69 = vmatprep.subr.mxu0 0.0
    %70 = vmatpush1.msra.mxu0 0.0
    %71 = vmatprep.subr.mxu0 0.0
    %72 = vmatpush1.msra.mxu0 0.0
    %73 = vmatprep.subr.mxu0 0.0
    %74 = vmatpush1.msra.mxu0 0.0
    %75 = vmatprep.subr.mxu0 0.0
    %76 = vmatpush1.msra.mxu0 0.0
    %77 = vmatprep.subr.mxu0 0.0
    %78 = vmatpush1.msra.mxu0 0.0
    %79 = vmatprep.subr.mxu0 0.0
    %80 = vmatpush1.msra.mxu0 0.0
    %81 = vmatprep.subr.mxu0 0.0
    %82 = vmatpush1.msra.mxu0 0.0
    %83 = vmatprep.subr.mxu0 0.0
    %84 = vmatpush1.msra.mxu0 0.0
    %85 = vmatprep.subr.mxu0 0.0
    %86 = vmatpush1.msra.mxu0 0.0
    %87 = vmatprep.subr.mxu0 0.0
    %88 = vmatpush1.msra.mxu0 0.0
    %89 = vmatprep.subr.mxu0 0.0
    %90 = vmatpush1.msra.mxu0 0.0
    %91 = vmatprep.subr.mxu0 0.0
    %92 = vmatpush1.msra.mxu0 0.0
    %93 = vmatprep.subr.mxu0 0.0
    %94 = vmatpush1.msra.mxu0 0.0
    %95 = vmatprep.subr.mxu0 0.0
    %96 = vmatpush1.msra.mxu0 0.0
    %97 = vmatprep.subr.mxu0 0.0
    %98 = vmatpush1.msra.mxu0 0.0
    %99 = vmatprep.subr.mxu0 0.0
    %100 = vmatpush1.msra.mxu0 0.0
    %101 = vmatprep.subr.mxu0 0.0
    %102 = vmatpush1.msra.mxu0 0.0
    %103 = vmatprep.subr.mxu0 0.0
    %104 = vmatpush1.msra.mxu0 0.0
    %105 = vmatprep.subr.mxu0 0.0
    %106 = vmatpush1.msra.mxu0 0.0
    %107 = vmatprep.subr.mxu0 0.0
    %108 = vmatpush1.msra.mxu0 0.0
    %109 = vmatprep.subr.mxu0 0.0
    %110 = vmatpush1.msra.mxu0 0.0
    %111 = vmatprep.subr.mxu0 0.0
    %112 = vmatpush1.msra.mxu0 0.0
    %113 = vmatprep.subr.mxu0 0.0
    %114 = vmatpush1.msra.mxu0 0.0
    %115 = vmatprep.subr.mxu0 0.0
    %116 = vmatpush1.msra.mxu0 0.0
    %117 = vmatprep.subr.mxu0 0.0
    %118 = vmatpush1.msra.mxu0 0.0
    %119 = vmatprep.subr.mxu0 0.0
    %120 = vmatpush1.msra.mxu0 0.0
    %121 = vmatprep.mubr.f32.mxu0 0.0
    %122 = vmatmul.mubr.f32.gmra.mrb[0].mxu0 %v55
    %v123 = vpop.f32.mrb[0].mxu0
    %v124 = vadd.f32 %v51, %v123
    %v125 = vpop.f32.mrb[0].mxu0
    %126 = vdwg.mxu0
    %127 = vst [vmem:[#allocation7] sm:$0x3] %v124
    // Predicated region
    $region22: #{aux_head_forward.1} parent=1 // pred_check
      _
    $region23: #{aux_head_forward.1} parent=1 // pred_check_branch
      %129 = sbr.rel (0) target = $region25
    $region24: #{aux_head_forward.1} parent=1 // pred_region
      %s131 = ssub.s32 32, 32
      %132 = vsyncadd [#allocation4], %s131
      %s134 = sshll.u32 [#allocation7], 4
      %s135 = int_to_ptr.vmem [resolvable:$true] %s134
      %137 = dma.vmem_to_hbm [thread:$0]  %s135, 32, %s3, [#allocation4]
    $region25: #{aux_head_forward.1} parent=1 // pred_fallthru
      _
    // Predicated region
    $region26: #{aux_head_forward.1} parent=1 // pred_check
      _
    $region27: #{aux_head_forward.1} parent=1 // pred_check_branch
      %139 = sbr.rel (0) target = $region29
    $region28: #{aux_head_forward.1} parent=1 // pred_region
      %140 = dma.done [#allocation4], 32
    $region29: #{aux_head_forward.1} parent=1 // pred_fallthru
      _
    %141 = vsyncpa [#allocation3], 1
    %142 = vsyncpa [#allocation6], 1
    %143 = vsyncpa [#allocation4], 1

</llo_original>
